<compile_context>
chip_gen: v5e
topology: v5e:2x2
jax: 0.10.0
libtpu: 0.0.40
codegen_flags: <defaults>
</compile_context>

<pallas_src>
import jax
import jax.numpy as jnp
from jax.experimental import pallas as pl
from jax.experimental.pallas import tpu as pltpu


def _ceil_to(x, m):
    return ((x + m - 1) // m) * m


def _floor_to(x, m):
    return (x // m) * m


def _vmem_capacity_bytes():
    try:
        info = pltpu.get_tpu_info()
        cap = getattr(info, "vmem_capacity_bytes", None)
        if cap:
            return int(cap)
    except Exception:
        pass
    return 64 * 1024 * 1024  # conservative fallback (v7x physical VMEM)


def _mbf_fused_kernel(app_ref, spa_ref,
                      w1_ref, b1_ref, w2_ref, b2_ref, w3_ref, b3_ref,
                      out_ref):
    """One row-tile of the fully-fused MultiBranchFusion forward."""
    wdt = w1_ref.dtype
    # fc1 / fc2 over ALL branches at once (lane axis = C*sub); f32 accumulation.
    # TODO(synk): fc1+fc2 could be one MXU push via a block-diagonal (A+S, 2*CS) weight,
    # but that needs an extra activation concat pass (or a shape-fragile in-kernel
    # minor-dim concat) and doubles MXU FLOPs at production widths, so it is skipped.
    a = jnp.dot(app_ref[...].astype(wdt), w1_ref[...],
                preferred_element_type=jnp.float32) + b1_ref[...]
    s = jnp.dot(spa_ref[...].astype(wdt), w2_ref[...],
                preferred_element_type=jnp.float32) + b2_ref[...]
    # gate + inner ReLU stay f32 on the VPU (v5e has no bf16 VPU datapath).
    h = jnp.maximum(a * s, 0.0)
    # sum_c fc3_c(h_c) == h @ W3_all ; folded bias, outer ReLU, store.
    o = jnp.dot(h.astype(w3_ref.dtype), w3_ref[...],
                preferred_element_type=jnp.float32) + b3_ref[...]
    out_ref[...] = jnp.maximum(o, 0.0).astype(out_ref.dtype)


def multi_branch_fusion(appearance, spatial, w1, b1, w2, b2, w3, b3,
                        *, row_tile=1024, compute_dtype=None):
    """appearance: (N, A), spatial: (N, S)
       w1: (C, A, sub), b1: (C, sub)
       w2: (C, S, sub), b2: (C, sub)
       w3: (C, sub, H), b3: (C, H)
       returns (N, H) float32

       compute_dtype: e.g. jnp.bfloat16 -> weights are cast (halves weight HBM traffic,
       bf16 MXU on fc3); to get full-bf16 MXU on fc1/fc2 pass bf16 activations from the
       caller (no wrapper-side activation cast is performed here).
    """
    N, A = appearance.shape
    _, S = spatial.shape
    C, _, sub = w1.shape
    H = w3.shape[2]
    CS = C * sub  # fused inner width (== H for this module)

    # ---- pack per-branch weights lane-dense (weights only; one-time, amortized) ----
    # a_fused[:, c*sub + j] = appearance @ w1[c, :, j] + b1[c, j]
    w1f = jnp.transpose(w1, (1, 0, 2)).reshape(A, CS)
    w2f = jnp.transpose(w2, (1, 0, 2)).reshape(S, CS)
    w3f = w3.reshape(CS, H)                                       # stack branches on K
    b1f = b1.reshape(1, CS).astype(jnp.float32)
    b2f = b2.reshape(1, CS).astype(jnp.float32)
    b3s = jnp.sum(b3, axis=0).reshape(1, H).astype(jnp.float32)   # fold C fc3 biases

    if compute_dtype is not None:
        w1f = w1f.astype(compute_dtype)
        w2f = w2f.astype(compute_dtype)
        w3f = w3f.astype(compute_dtype)

    act_bytes = jnp.dtype(appearance.dtype).itemsize
    wt_bytes = jnp.dtype(w1f.dtype).itemsize

    # ---- row tiling: multiple of the native sublane tiling for the activation dtype ----
    row_mult = max(8, 32 // max(1, act_bytes))          # 8 (f32) / 16 (bf16) / 32 (i8)
    tn = min(int(row_tile), _ceil_to(N, row_mult))
    tn = max(row_mult, _floor_to(tn, row_mult))
    # prefer >= 2 grid steps so the "parallel" row axis can shard across both TCs (v7x)
    if N >= 2 * row_mult and tn >= N:
        tn = max(row_mult, min(tn, _ceil_to((N + 1) // 2, row_mult)))

    # ---- generation-aware VMEM budget: resident weights + double-buffered row tiles ----
    vmem_cap = _vmem_capacity_bytes()                    # 128 MiB v5e/v6e, 64 MiB v7x
    vmem_limit = int(vmem_cap * 7 // 8)                  # leave headroom for scratch
    weight_bytes = (A * CS + S * CS + CS * H) * wt_bytes + (2 * CS + H) * 4
    budget = int(vmem_limit * 3 // 4) - weight_bytes

    def _tile_bytes(t):                                  # double-buffered in/out blocks
        return 2 * t * ((A + S) * act_bytes + H * 4)

    while tn > row_mult and _tile_bytes(tn) > budget:
        tn = max(row_mult, _floor_to(tn // 2, row_mult))

    grid = (pl.cdiv(N, tn),)                             # ragged final tile is masked

    def _row_spec(width):
        return pl.BlockSpec((tn, width), lambda n: (n, 0))

    def _resident_spec(shape):
        # constant block index -> VMEM-resident across row tiles; single-buffered.
        return pl.BlockSpec(shape, lambda n: (0, 0), pipeline_mode=pl.Buffered(1))

    out = pl.pallas_call(
        _mbf_fused_kernel,
        out_shape=jax.ShapeDtypeStruct((N, H), jnp.float32),
        grid_spec=pltpu.PrefetchScalarGridSpec(
            num_scalar_prefetch=0,
            grid=grid,
            in_specs=[
                _row_spec(A),                 # appearance rows
                _row_spec(S),                 # spatial rows
                _resident_spec((A, CS)),      # fused fc1 weight
                _resident_spec((1, CS)),      # fused fc1 bias
                _resident_spec((S, CS)),      # fused fc2 weight
                _resident_spec((1, CS)),      # fused fc2 bias
                _resident_spec((CS, H)),      # stacked fc3 weight
                _resident_spec((1, H)),       # folded fc3 bias
            ],
            # TODO(synk): for H/CS < 128 a lane-packed (tn,H)->(tn/k,k*H) store would
            # remove masked vst, but needs an in-kernel sublane->lane relayout; skipped
            # since production H is a multiple of 128.
            out_specs=pl.BlockSpec((tn, H), lambda n: (n, 0)),
        ),
        compiler_params=pltpu.CompilerParams(
            dimension_semantics=("parallel",),   # independent row tiles -> megacore
            vmem_limit_bytes=vmem_limit,
        ),
    )(appearance, spatial, w1f, b1f, w2f, b2f, w3f, b3s)

    return out


def _reference(appearance, spatial, w1, b1, w2, b2, w3, b3, compute_dtype=None):
    """Pure-JAX reference mirroring the PyTorch forward (per-branch structure).
       compute_dtype mimics the kernel's MXU-operand rounding for a tight bf16 check."""
    def rnd(x):
        return x if compute_dtype is None else x.astype(compute_dtype).astype(jnp.float32)

    outs = []
    for c in range(w1.shape[0]):
        a = rnd(appearance) @ rnd(w1[c]) + b1[c]
        s = rnd(spatial) @ rnd(w2[c]) + b2[c]
        h = jnp.maximum(a * s, 0.0)
        outs.append(rnd(h) @ rnd(w3[c]) + b3[c])
    return jnp.maximum(jnp.stack(outs).sum(0), 0.0)


if __name__ == "__main__":
    key = jax.random.PRNGKey(0)

    # module hyper-params (small, consistent with the forward)
    appearance_size = 32
    spatial_size = 24
    hidden_state_size = 32
    cardinality = 4
    sub = hidden_state_size // cardinality

    kp = jax.random.split(key, 6)
    w1 = 0.1 * jax.random.normal(kp[0], (cardinality, appearance_size, sub), jnp.float32)
    b1 = 0.1 * jax.random.normal(kp[1], (cardinality, sub), jnp.float32)
    w2 = 0.1 * jax.random.normal(kp[2], (cardinality, spatial_size, sub), jnp.float32)
    b2 = 0.1 * jax.random.normal(kp[3], (cardinality, sub), jnp.float32)
    w3 = 0.1 * jax.random.normal(kp[4], (cardinality, sub, hidden_state_size), jnp.float32)
    b3 = 0.1 * jax.random.normal(kp[5], (cardinality, hidden_state_size), jnp.float32)

    # (N=8, big tile): single-step grid.  (N=50, tile=32): 2-step ragged grid with a
    # masked final row tile -> exercises the pad/slice-free path.
    for n_rows, rt in ((8, 1024), (50, 32)):
        ka, ks = jax.random.split(jax.random.fold_in(key, n_rows))
        appearance = jax.random.normal(ka, (n_rows, appearance_size), jnp.float32)
        spatial = jax.random.normal(ks, (n_rows, spatial_size), jnp.float32)

        # f32 path (exact up to f32 re-association)
        ref = _reference(appearance, spatial, w1, b1, w2, b2, w3, b3)
        out = jax.block_until_ready(
            multi_branch_fusion(appearance, spatial, w1, b1, w2, b2, w3, b3, row_tile=rt))
        assert out.shape == (n_rows, hidden_state_size)
        assert jnp.allclose(out, ref, atol=1e-4, rtol=1e-4), "f32 mismatch vs reference"

        # bf16-weight path, checked against a bf16-rounded reference (tight tolerance)
        ref_bf = _reference(appearance, spatial, w1, b1, w2, b2, w3, b3,
                            compute_dtype=jnp.bfloat16)
        out_bf = jax.block_until_ready(
            multi_branch_fusion(appearance, spatial, w1, b1, w2, b2, w3, b3,
                                row_tile=rt, compute_dtype=jnp.bfloat16))
        assert out_bf.shape == (n_rows, hidden_state_size)
        assert jnp.allclose(out_bf, ref_bf, atol=5e-3, rtol=5e-3), "bf16 mismatch vs reference"

    print("KERNEL_OK")
</pallas_src>

<mosaic_0001>
module attributes {stable_mosaic.version = 11 : i64} {
  func.func @_mbf_fused_kernel(%arg0: i32, %arg1: memref<8x32xf32, #tpu.memory_space<vmem>>, %arg2: memref<8x24xf32, #tpu.memory_space<vmem>>, %arg3: memref<32x32xf32, #tpu.memory_space<vmem>>, %arg4: memref<1x32xf32, #tpu.memory_space<vmem>>, %arg5: memref<24x32xf32, #tpu.memory_space<vmem>>, %arg6: memref<1x32xf32, #tpu.memory_space<vmem>>, %arg7: memref<32x32xf32, #tpu.memory_space<vmem>>, %arg8: memref<1x32xf32, #tpu.memory_space<vmem>>, %arg9: memref<8x32xf32, #tpu.memory_space<vmem>>) attributes {dimension_semantics = [#tpu.dimension_semantics<parallel>], iteration_bounds = array<i64: 1>, scalar_prefetch = 0 : i64, scratch_operands = 0 : i64, tpu.core_type = #tpu.core_type<tc>, window_params = [{transform_indices = @transform_0, window_bounds = array<i64: 8, 32>}, {transform_indices = @transform_1, window_bounds = array<i64: 8, 24>}, {pipeline_mode = #tpu.pipeline_mode<synchronous>, transform_indices = @transform_2, window_bounds = array<i64: 32, 32>}, {pipeline_mode = #tpu.pipeline_mode<synchronous>, transform_indices = @transform_3, window_bounds = array<i64: 1, 32>}, {pipeline_mode = #tpu.pipeline_mode<synchronous>, transform_indices = @transform_4, window_bounds = array<i64: 24, 32>}, {pipeline_mode = #tpu.pipeline_mode<synchronous>, transform_indices = @transform_5, window_bounds = array<i64: 1, 32>}, {pipeline_mode = #tpu.pipeline_mode<synchronous>, transform_indices = @transform_6, window_bounds = array<i64: 32, 32>}, {pipeline_mode = #tpu.pipeline_mode<synchronous>, transform_indices = @transform_7, window_bounds = array<i64: 1, 32>}, {transform_indices = @transform_8, window_bounds = array<i64: 8, 32>}]} {
    %c0 = arith.constant 0 : index
    %c0_0 = arith.constant 0 : index
    %0 = vector.load %arg1[%c0, %c0_0] : memref<8x32xf32, #tpu.memory_space<vmem>>, vector<8x32xf32>
    %c0_1 = arith.constant 0 : index
    %c0_2 = arith.constant 0 : index
    %1 = vector.load %arg3[%c0_1, %c0_2] : memref<32x32xf32, #tpu.memory_space<vmem>>, vector<32x32xf32>
    %cst = arith.constant dense<0.000000e+00> : vector<8x32xf32>
    %2 = tpu.matmul %0, %1, %cst {dimension_numbers = #tpu.dot_dimension_numbers<[1], [0], [0], [1], [0, 0, 1, 1], [], []>} : vector<8x32xf32>, vector<32x32xf32>, vector<8x32xf32> -> vector<8x32xf32>
    %c0_3 = arith.constant 0 : index
    %c0_4 = arith.constant 0 : index
    %3 = vector.load %arg4[%c0_3, %c0_4] : memref<1x32xf32, #tpu.memory_space<vmem>>, vector<1x32xf32>
    %4 = vector.broadcast %3 : vector<1x32xf32> to vector<8x32xf32>
    %5 = arith.addf %2, %4 : vector<8x32xf32>
    %c0_5 = arith.constant 0 : index
    %c0_6 = arith.constant 0 : index
    %6 = vector.load %arg2[%c0_5, %c0_6] : memref<8x24xf32, #tpu.memory_space<vmem>>, vector<8x24xf32>
    %c0_7 = arith.constant 0 : index
    %c0_8 = arith.constant 0 : index
    %7 = vector.load %arg5[%c0_7, %c0_8] : memref<24x32xf32, #tpu.memory_space<vmem>>, vector<24x32xf32>
    %cst_9 = arith.constant dense<0.000000e+00> : vector<8x32xf32>
    %8 = tpu.matmul %6, %7, %cst_9 {dimension_numbers = #tpu.dot_dimension_numbers<[1], [0], [0], [1], [0, 0, 1, 1], [], []>} : vector<8x24xf32>, vector<24x32xf32>, vector<8x32xf32> -> vector<8x32xf32>
    %c0_10 = arith.constant 0 : index
    %c0_11 = arith.constant 0 : index
    %9 = vector.load %arg6[%c0_10, %c0_11] : memref<1x32xf32, #tpu.memory_space<vmem>>, vector<1x32xf32>
    %10 = vector.broadcast %9 : vector<1x32xf32> to vector<8x32xf32>
    %11 = arith.addf %8, %10 : vector<8x32xf32>
    %12 = arith.mulf %5, %11 : vector<8x32xf32>
    %cst_12 = arith.constant 0.000000e+00 : f32
    %13 = vector.broadcast %cst_12 : f32 to vector<8x32xf32>
    %14 = arith.maximumf %12, %13 : vector<8x32xf32>
    %c0_13 = arith.constant 0 : index
    %c0_14 = arith.constant 0 : index
    %15 = vector.load %arg7[%c0_13, %c0_14] : memref<32x32xf32, #tpu.memory_space<vmem>>, vector<32x32xf32>
    %cst_15 = arith.constant dense<0.000000e+00> : vector<8x32xf32>
    %16 = tpu.matmul %14, %15, %cst_15 {dimension_numbers = #tpu.dot_dimension_numbers<[1], [0], [0], [1], [0, 0, 1, 1], [], []>} : vector<8x32xf32>, vector<32x32xf32>, vector<8x32xf32> -> vector<8x32xf32>
    %c0_16 = arith.constant 0 : index
    %c0_17 = arith.constant 0 : index
    %17 = vector.load %arg8[%c0_16, %c0_17] : memref<1x32xf32, #tpu.memory_space<vmem>>, vector<1x32xf32>
    %18 = vector.broadcast %17 : vector<1x32xf32> to vector<8x32xf32>
    %19 = arith.addf %16, %18 : vector<8x32xf32>
    %cst_18 = arith.constant 0.000000e+00 : f32
    %20 = vector.broadcast %cst_18 : f32 to vector<8x32xf32>
    %21 = arith.maximumf %19, %20 : vector<8x32xf32>
    %c0_19 = arith.constant 0 : index
    %c0_20 = arith.constant 0 : index
    %22 = vector.load %arg9[%c0_19, %c0_20] : memref<8x32xf32, #tpu.memory_space<vmem>>, vector<8x32xf32>
    tpu.vector_store %arg9[%c0_19, %c0_20], %21 {strides = array<i32>} : memref<8x32xf32, #tpu.memory_space<vmem>>, vector<8x32xf32>,
    return
  }
  func.func @transform_0(%arg0: i32) -> (i32, i32) {
    %c0_i32 = arith.constant 0 : i32
    %c0_i32_0 = arith.constant 0 : i32
    return %arg0, %c0_i32 : i32, i32
  }
  func.func @transform_1(%arg0: i32) -> (i32, i32) {
    %c0_i32 = arith.constant 0 : i32
    %c0_i32_0 = arith.constant 0 : i32
    return %arg0, %c0_i32 : i32, i32
  }
  func.func @transform_2(%arg0: i32) -> (i32, i32) {
    %c0_i32 = arith.constant 0 : i32
    %c0_i32_0 = arith.constant 0 : i32
    %c0_i32_1 = arith.constant 0 : i32
    return %c0_i32, %c0_i32_0 : i32, i32
  }
  func.func @transform_3(%arg0: i32) -> (i32, i32) {
    %c0_i32 = arith.constant 0 : i32
    %c0_i32_0 = arith.constant 0 : i32
    %c0_i32_1 = arith.constant 0 : i32
    return %c0_i32, %c0_i32_0 : i32, i32
  }
  func.func @transform_4(%arg0: i32) -> (i32, i32) {
    %c0_i32 = arith.constant 0 : i32
    %c0_i32_0 = arith.constant 0 : i32
    %c0_i32_1 = arith.constant 0 : i32
    return %c0_i32, %c0_i32_0 : i32, i32
  }
  func.func @transform_5(%arg0: i32) -> (i32, i32) {
    %c0_i32 = arith.constant 0 : i32
    %c0_i32_0 = arith.constant 0 : i32
    %c0_i32_1 = arith.constant 0 : i32
    return %c0_i32, %c0_i32_0 : i32, i32
  }
  func.func @transform_6(%arg0: i32) -> (i32, i32) {
    %c0_i32 = arith.constant 0 : i32
    %c0_i32_0 = arith.constant 0 : i32
    %c0_i32_1 = arith.constant 0 : i32
    return %c0_i32, %c0_i32_0 : i32, i32
  }
  func.func @transform_7(%arg0: i32) -> (i32, i32) {
    %c0_i32 = arith.constant 0 : i32
    %c0_i32_0 = arith.constant 0 : i32
    %c0_i32_1 = arith.constant 0 : i32
    return %c0_i32, %c0_i32_0 : i32, i32
  }
  func.func @transform_8(%arg0: i32) -> (i32, i32) {
    %c0_i32 = arith.constant 0 : i32
    %c0_i32_0 = arith.constant 0 : i32
    return %arg0, %c0_i32 : i32, i32
  }
}

</mosaic_0001>

<llo_original>
// kernel: tpu_custom_call.1
$region0: #{tpu_custom_call.1}
  #allocation0 [shape = 'u32[]', space=smem, size = 0x4, offset = 0x4, fixed_abs, tag = 'smem constant byte address 0x4 - core index']
  #allocation1 [shape = 'u32[72,128]{1,0:T(1,128)}', space=vmem, size = 0x9000, scoped, tag = 'internal scratch']
  %s0 = inlined_call_operand.hbm [shape: f32[8,32], index: 0, kind: input, shape index: {}]
  %s1 = inlined_call_operand.hbm [shape: f32[8,24], index: 1, kind: input, shape index: {}]
  %s2 = inlined_call_operand.hbm [shape: f32[32,32], index: 2, kind: input, shape index: {}]
  %s3 = inlined_call_operand.vmem [shape: f32[1,32], index: 3, kind: input, shape index: {}]
  %s4 = inlined_call_operand.hbm [shape: f32[24,32], index: 4, kind: input, shape index: {}]
  %s5 = inlined_call_operand.vmem [shape: f32[1,32], index: 5, kind: input, shape index: {}]
  %s6 = inlined_call_operand.hbm [shape: f32[32,32], index: 6, kind: input, shape index: {}]
  %s7 = inlined_call_operand.vmem [shape: f32[1,32], index: 7, kind: input, shape index: {}]
  %s8 = inlined_call_operand.hbm [shape: f32[8,32], index: 8, kind: output, shape index: {}]
  %s9 = sld [smem:[#allocation0]]
  $region62: #{tpu_custom_call.1} parent=0
    _
  %s11 = ssub.s32 1, %s9
  %s12 = scalar_select 0, %s11, %s9
  $region1: #{tpu_custom_call.1} parent=0
    #allocation2 [shape = 'u8[4096]{0}', space=vmem, size = 0x1000, scoped, tag = 'input window, operand 0, single buffered']
    #allocation3 [shape = 's32[1]{0}', space=sflag, size = 0x4, scoped, tag = 'scoped memory for tpu_custom_call.1']
    #allocation4 [shape = 's32[1]{0}', space=sflag, size = 0x4, scoped, tag = 'scoped memory for tpu_custom_call.1']
    #allocation5 [shape = 'u8[4096]{0}', space=vmem, size = 0x1000, scoped, tag = 'input window, operand 1, single buffered']
    #allocation6 [shape = 's32[1]{0}', space=sflag, size = 0x4, scoped, tag = 'scoped memory for tpu_custom_call.1']
    #allocation7 [shape = 'u8[16384]{0}', space=vmem, size = 0x4000, scoped, tag = 'input window, operand 2, single buffered']
    #allocation8 [shape = 'u8[12288]{0}', space=vmem, size = 0x3000, scoped, tag = 'input window, operand 4, single buffered']
    #allocation9 [shape = 's32[1]{0}', space=sflag, size = 0x4, scoped, tag = 'scoped memory for tpu_custom_call.1']
    #allocation10 [shape = 'u8[16384]{0}', space=vmem, size = 0x4000, scoped, tag = 'input window, operand 6, single buffered']
    #allocation11 [shape = 'u8[4096]{0}', space=vmem, size = 0x1000, scoped, tag = 'output window, operand 0, single buffered']
    %13 = vsyncpa [#allocation3], 0
    %14 = vsyncpa [#allocation6], 0
    %15 = vsyncpa [#allocation9], 0
    %16 = vsyncpa [#allocation4], 0
    // Predicated region
    $region2: #{tpu_custom_call.1} parent=1 // pred_check
      _
    $region3: #{tpu_custom_call.1} parent=1 // pred_check_branch
      %18 = sbr.rel (0) target = $region5
    $region4: #{tpu_custom_call.1} parent=1 // pred_region
      %20 = vsyncadd [#allocation3], 0
      %s22 = sshll.u32 %s0, 4
      %s23 = int_to_ptr.hbm [resolvable:$true] %s22
      %s24 = sshll.u32 [#allocation2], 4
      %s25 = int_to_ptr.vmem [resolvable:$true] %s24
      %27 = dma.hbm_to_vmem [thread:$0]  %s23, 128, %s25, [#allocation3]
    $region5: #{tpu_custom_call.1} parent=1 // pred_fallthru
      _
    // Predicated region
    $region6: #{tpu_custom_call.1} parent=1 // pred_check
      _
    $region7: #{tpu_custom_call.1} parent=1 // pred_check_branch
      %29 = sbr.rel (0) target = $region9
    $region8: #{tpu_custom_call.1} parent=1 // pred_region
      %31 = vsyncadd [#allocation6], 0
      %s33 = sshll.u32 %s1, 4
      %s34 = int_to_ptr.hbm [resolvable:$true] %s33
      %s35 = sshll.u32 [#allocation5], 4
      %s36 = int_to_ptr.vmem [resolvable:$true] %s35
      %38 = dma.hbm_to_vmem [thread:$0]  %s34, 128, %s36, [#allocation6]
    $region9: #{tpu_custom_call.1} parent=1 // pred_fallthru
      _
    // Predicated region
    $region10: #{tpu_custom_call.1} parent=1 // pred_check
      _
    $region11: #{tpu_custom_call.1} parent=1 // pred_check_branch
      %40 = sbr.rel (0) target = $region13
    $region12: #{tpu_custom_call.1} parent=1 // pred_region
      %42 = vsyncadd [#allocation6], 0
      %s43 = sshll.u32 %s2, 4
      %s44 = int_to_ptr.hbm [resolvable:$true] %s43
      %s45 = sshll.u32 [#allocation7], 4
      %s46 = int_to_ptr.vmem [resolvable:$true] %s45
      %51 = dma.hbm_to_vmem [thread:$0]  %s44, 512, %s46, [#allocation6], 128, 128, 8
    $region13: #{tpu_custom_call.1} parent=1 // pred_fallthru
      _
    // Predicated region
    $region14: #{tpu_custom_call.1} parent=1 // pred_check
      _
    $region15: #{tpu_custom_call.1} parent=1 // pred_check_branch
      %53 = sbr.rel (0) target = $region17
    $region16: #{tpu_custom_call.1} parent=1 // pred_region
      _
    $region17: #{tpu_custom_call.1} parent=1 // pred_fallthru
      _
    // Predicated region
    $region18: #{tpu_custom_call.1} parent=1 // pred_check
      _
    $region19: #{tpu_custom_call.1} parent=1 // pred_check_branch
      %55 = sbr.rel (0) target = $region21
    $region20: #{tpu_custom_call.1} parent=1 // pred_region
      %57 = vsyncadd [#allocation9], 0
      %s58 = sshll.u32 %s4, 4
      %s59 = int_to_ptr.hbm [resolvable:$true] %s58
      %s60 = sshll.u32 [#allocation8], 4
      %s61 = int_to_ptr.vmem [resolvable:$true] %s60
      %66 = dma.hbm_to_vmem [thread:$0]  %s59, 384, %s61, [#allocation9], 128, 128, 8
    $region21: #{tpu_custom_call.1} parent=1 // pred_fallthru
      _
    // Predicated region
    $region22: #{tpu_custom_call.1} parent=1 // pred_check
      _
    $region23: #{tpu_custom_call.1} parent=1 // pred_check_branch
      %68 = sbr.rel (0) target = $region25
    $region24: #{tpu_custom_call.1} parent=1 // pred_region
      _
    $region25: #{tpu_custom_call.1} parent=1 // pred_fallthru
      _
    // Predicated region
    $region26: #{tpu_custom_call.1} parent=1 // pred_check
      _
    $region27: #{tpu_custom_call.1} parent=1 // pred_check_branch
      %70 = sbr.rel (0) target = $region29
    $region28: #{tpu_custom_call.1} parent=1 // pred_region
      %72 = vsyncadd [#allocation9], 0
      %s73 = sshll.u32 %s6, 4
      %s74 = int_to_ptr.hbm [resolvable:$true] %s73
      %s75 = sshll.u32 [#allocation10], 4
      %s76 = int_to_ptr.vmem [resolvable:$true] %s75
      %81 = dma.hbm_to_vmem [thread:$0]  %s74, 512, %s76, [#allocation9], 128, 128, 8
    $region29: #{tpu_custom_call.1} parent=1 // pred_fallthru
      _
    // Predicated region
    $region30: #{tpu_custom_call.1} parent=1 // pred_check
      _
    $region31: #{tpu_custom_call.1} parent=1 // pred_check_branch
      %83 = sbr.rel (0) target = $region33
    $region32: #{tpu_custom_call.1} parent=1 // pred_region
      _
    $region33: #{tpu_custom_call.1} parent=1 // pred_fallthru
      _
    // Predicated region
    $region34: #{tpu_custom_call.1} parent=1 // pred_check
      _
    $region35: #{tpu_custom_call.1} parent=1 // pred_check_branch
      %85 = sbr.rel (0) target = $region37
    $region36: #{tpu_custom_call.1} parent=1 // pred_region
      %87 = dma.done [#allocation3], 128
    $region37: #{tpu_custom_call.1} parent=1 // pred_fallthru
      _
    // Predicated region
    $region38: #{tpu_custom_call.1} parent=1 // pred_check
      _
    $region39: #{tpu_custom_call.1} parent=1 // pred_check_branch
      %89 = sbr.rel (0) target = $region41
    $region40: #{tpu_custom_call.1} parent=1 // pred_region
      %91 = dma.done [#allocation6], 128
    $region41: #{tpu_custom_call.1} parent=1 // pred_fallthru
      _
    // Predicated region
    $region42: #{tpu_custom_call.1} parent=1 // pred_check
      _
    $region43: #{tpu_custom_call.1} parent=1 // pred_check_branch
      %93 = sbr.rel (0) target = $region45
    $region44: #{tpu_custom_call.1} parent=1 // pred_region
      %95 = dma.done [#allocation6], 512
    $region45: #{tpu_custom_call.1} parent=1 // pred_fallthru
      _
    // Predicated region
    $region46: #{tpu_custom_call.1} parent=1 // pred_check
      _
    $region47: #{tpu_custom_call.1} parent=1 // pred_check_branch
      %97 = sbr.rel (0) target = $region49
    $region48: #{tpu_custom_call.1} parent=1 // pred_region
      %99 = dma.done [#allocation9], 384
    $region49: #{tpu_custom_call.1} parent=1 // pred_fallthru
      _
    // Predicated region
    $region50: #{tpu_custom_call.1} parent=1 // pred_check
      _
    $region51: #{tpu_custom_call.1} parent=1 // pred_check_branch
      %101 = sbr.rel (0) target = $region53
    $region52: #{tpu_custom_call.1} parent=1 // pred_region
      %103 = dma.done [#allocation9], 512
    $region53: #{tpu_custom_call.1} parent=1 // pred_fallthru
      _
    %v104 = vld [vmem:[#allocation2] sm:$0xff]
    %v105 = vld [vmem:[#allocation7] sm:$0xff]
    %v106 = vld [vmem:[#allocation7 + $0x8] sm:$0xff]
    %v107 = vld [vmem:[#allocation7 + $0x10] sm:$0xff]
    %v108 = vld [vmem:[#allocation7 + $0x18] sm:$0xff]
    %v109 = vld [vmem:[%s3] sm:$0x1]
    %v111 = vperm.slane %v109, 0
    %vm113 = vcmask 261120
    %v115 = vsel %vm113, %v104, 0
    %117 = vmatpush.msra.mxu0 0.0
    %118 = vmatpush.msra.mxu0 0.0
    %119 = vmatpush.msra.mxu0 0.0
    %120 = vmatpush.msra.mxu0 0.0
    %121 = vmatpush.msra.mxu0 0.0
    %122 = vmatpush.msra.mxu0 0.0
    %123 = vmatpush.msra.mxu0 0.0
    %124 = vmatpush.msra.mxu0 0.0
    %125 = vmatpush.msra.mxu0 0.0
    %126 = vmatpush.msra.mxu0 0.0
    %127 = vmatpush.msra.mxu0 0.0
    %128 = vmatpush.msra.mxu0 0.0
    %129 = vmatpush.msra.mxu0 %v108
    %130 = vmatpush.msra.mxu0 %v107
    %131 = vmatpush.msra.mxu0 %v106
    %132 = vmatpush.msra.mxu0 %v105
    %133 = vmatmul.f32.gmra.mxu0 %v115
    %v134 = vpop.f32.mrf.mxu0
    %v135 = vadd.f32 %v111, %v134
    %136 = vdwg.mxu0
    %v137 = vld [vmem:[#allocation5] sm:$0xff]
    %v138 = vld [vmem:[#allocation8] sm:$0xff]
    %v139 = vld [vmem:[#allocation8 + $0x8] sm:$0xff]
    %v140 = vld [vmem:[#allocation8 + $0x10] sm:$0xff]
    %v141 = vld [vmem:[%s5] sm:$0x1]
    %v143 = vperm.slane %v141, 0
    %vm145 = vcmask 195584
    %v147 = vsel %vm145, %v137, 0
    %149 = vmatpush.msra.mxu0 0.0
    %150 = vmatpush.msra.mxu0 0.0
    %151 = vmatpush.msra.mxu0 0.0
    %152 = vmatpush.msra.mxu0 0.0
    %153 = vmatpush.msra.mxu0 0.0
    %154 = vmatpush.msra.mxu0 0.0
    %155 = vmatpush.msra.mxu0 0.0
    %156 = vmatpush.msra.mxu0 0.0
    %157 = vmatpush.msra.mxu0 0.0
    %158 = vmatpush.msra.mxu0 0.0
    %159 = vmatpush.msra.mxu0 0.0
    %160 = vmatpush.msra.mxu0 0.0
    %161 = vmatpush.msra.mxu0 0.0
    %162 = vmatpush.msra.mxu0 %v140
    %163 = vmatpush.msra.mxu0 %v139
    %164 = vmatpush.msra.mxu0 %v138
    %165 = vmatmul.f32.gmra.mxu0 %v147
    %v166 = vpop.f32.mrf.mxu0
    %v167 = vadd.f32 %v143, %v166
    %168 = vdwg.mxu0
    %v169 = vmul.f32 %v135, %v167
    %v170 = vmax.f32 %v169, 0.0
    %v171 = vld [vmem:[#allocation10] sm:$0xff]
    %v172 = vld [vmem:[#allocation10 + $0x8] sm:$0xff]
    %v173 = vld [vmem:[#allocation10 + $0x10] sm:$0xff]
    %v174 = vld [vmem:[#allocation10 + $0x18] sm:$0xff]
    %v175 = vld [vmem:[%s7] sm:$0x1]
    %v177 = vperm.slane %v175, 0
    %v180 = vsel %vm113, %v170, 0
    %182 = vmatpush.msra.mxu0 0.0
    %183 = vmatpush.msra.mxu0 0.0
    %184 = vmatpush.msra.mxu0 0.0
    %185 = vmatpush.msra.mxu0 0.0
    %186 = vmatpush.msra.mxu0 0.0
    %187 = vmatpush.msra.mxu0 0.0
    %188 = vmatpush.msra.mxu0 0.0
    %189 = vmatpush.msra.mxu0 0.0
    %190 = vmatpush.msra.mxu0 0.0
    %191 = vmatpush.msra.mxu0 0.0
    %192 = vmatpush.msra.mxu0 0.0
    %193 = vmatpush.msra.mxu0 0.0
    %194 = vmatpush.msra.mxu0 %v174
    %195 = vmatpush.msra.mxu0 %v173
    %196 = vmatpush.msra.mxu0 %v172
    %197 = vmatpush.msra.mxu0 %v171
    %198 = vmatmul.f32.gmra.mxu0 %v180
    %v199 = vpop.f32.mrf.mxu0
    %v200 = vadd.f32 %v177, %v199
    %201 = vdwg.mxu0
    %v202 = vmax.f32 %v200, 0.0
    %203 = vst.msk [vmem:[#allocation11] sm:$0xff] %vm113, %v202
    // Predicated region
    $region54: #{tpu_custom_call.1} parent=1 // pred_check
      _
    $region55: #{tpu_custom_call.1} parent=1 // pred_check_branch
      %205 = sbr.rel (0) target = $region57
    $region56: #{tpu_custom_call.1} parent=1 // pred_region
      %207 = vsyncadd [#allocation4], 0
      %s209 = sshll.u32 [#allocation11], 4
      %s210 = int_to_ptr.vmem [resolvable:$true] %s209
      %s211 = sshll.u32 %s8, 4
      %s212 = int_to_ptr.hbm [resolvable:$true] %s211
      %214 = dma.vmem_to_hbm [thread:$0]  %s210, 128, %s212, [#allocation4]
    $region57: #{tpu_custom_call.1} parent=1 // pred_fallthru
      _
    // Predicated region
    $region58: #{tpu_custom_call.1} parent=1 // pred_check
      _
    $region59: #{tpu_custom_call.1} parent=1 // pred_check_branch
      %216 = sbr.rel (0) target = $region61
    $region60: #{tpu_custom_call.1} parent=1 // pred_region
      %218 = dma.done [#allocation4], 128
    $region61: #{tpu_custom_call.1} parent=1 // pred_fallthru
      _
    %219 = vsyncpa [#allocation3], 1
    %220 = vsyncpa [#allocation6], 1
    %221 = vsyncpa [#allocation9], 1
    %222 = vsyncpa [#allocation4], 1

</llo_original>
